<compile_context>
chip_gen: v6e
topology: v6e:2x2x1
jax: 0.10.0
libtpu: 0.0.40
codegen_flags: <defaults>
</compile_context>

<pallas_src>
import jax
import jax.numpy as jnp
from jax.experimental import pallas as pl
from jax.experimental.pallas import tpu as pltpu


def _swish_kernel(x_ref, o_ref):
    # swish / SiLU: x * sigmoid(x), with sigmoid expressed via one EUP
    # transcendental and no divide:  sigmoid(x) = 0.5 * (tanh(x/2) + 1).
    xf = x_ref[...].astype(jnp.float32)
    y = xf * (0.5 * (jnp.tanh(0.5 * xf) + 1.0))
    o_ref[...] = y.astype(o_ref.dtype)


def _default_block_bytes():
    """Per-generation block size: amortize ~0.35us/grid-step vs. scoped VMEM."""
    try:
        kind = jax.devices()[0].device_kind.lower()
    except Exception:
        return 2 << 20
    if "v6" in kind:      # v6e: ~1.4 TB/s HBM, 32 MiB default scoped VMEM
        return 4 << 20
    if "7" in kind:       # v7x: ~3.2 TB/s per TC, 64 MiB physical VMEM
        return 8 << 20
    return 2 << 20        # v5e & older: 16 MiB default scoped VMEM -> stay small


def _swish_pallas_2d(x2d, block_bytes):
    rows, lanes = x2d.shape
    itemsize = jnp.dtype(x2d.dtype).itemsize
    # Sublane packing for the dtype: 8 (f32) / 16 (bf16, f16) / 32 (int8, fp8).
    sublane = max(8, 32 // itemsize)

    target_rows = max(
        sublane, (block_bytes // (lanes * itemsize)) // sublane * sublane
    )

    if rows <= target_rows:
        total_bytes = rows * lanes * itemsize
        if total_bytes >= (2 << 20) and rows >= 2 * sublane:
            # Mid-size tensor that would otherwise be one block: split in two
            # so the 1-D "parallel" grid can use both v7x TensorCores.
            half = -(-rows // 2)
            block_rows = -(-half // sublane) * sublane
        else:
            block_rows = rows                 # single full-array block
    else:
        block_rows = target_rows              # ragged last block is clamped

    grid = (pl.cdiv(rows, block_rows),)
    n = rows * lanes
    block_nbytes = block_rows * lanes * itemsize
    # 2 buffers x (in + out) x block, plus headroom; capped safely below
    # v7x's 64 MiB physical VMEM.
    vmem_limit = int(min(48 << 20, max(16 << 20, 4 * block_nbytes + (8 << 20))))

    return pl.pallas_call(
        _swish_kernel,
        out_shape=jax.ShapeDtypeStruct((rows, lanes), x2d.dtype),
        grid=grid,
        in_specs=[pl.BlockSpec((block_rows, lanes), lambda i: (i, 0))],
        out_specs=pl.BlockSpec((block_rows, lanes), lambda i: (i, 0)),
        compiler_params=pltpu.CompilerParams(
            dimension_semantics=("parallel",),
            vmem_limit_bytes=vmem_limit,
        ),
        cost_estimate=pl.CostEstimate(
            flops=4 * n, transcendentals=n, bytes_accessed=2 * n * itemsize
        ),
    )(x2d)


def swish(x, *, block_bytes=None, min_pallas_bytes=128 * 1024):
    """Elementwise swish (x * sigmoid(x)) for an array of any shape (e.g. NCHW)."""
    orig_shape = x.shape
    n = x.size
    itemsize = jnp.dtype(x.dtype).itemsize

    if n == 0:
        return x
    # Tiny inputs: pallas_call fixed overhead dominates -> fused XLA op.
    if n * itemsize < min_pallas_bytes:
        return x * jax.nn.sigmoid(x)

    if block_bytes is None:
        block_bytes = _default_block_bytes()

    # Widest lane-dense last dim that divides n exactly (unmasked vst path).
    lanes = 128
    for cand in (8192, 4096, 2048, 1024, 512, 256, 128):
        if n % cand == 0:
            lanes = cand
            break

    n_head = (n // lanes) * lanes
    n_tail = n - n_head
    if n_head == 0:
        # Fewer than 128 elements: not worth a kernel launch.
        return x * jax.nn.sigmoid(x)

    x_flat = jnp.ravel(x)
    if n_tail == 0:
        out = _swish_pallas_2d(x_flat.reshape(n_head // lanes, lanes), block_bytes)
        return out.reshape(orig_shape)

    # Ragged n: kernel on the 128-aligned head, plain jnp on the tiny tail
    # (no whole-array pad + slice passes).
    head = x_flat[:n_head].reshape(n_head // lanes, lanes)
    head_out = _swish_pallas_2d(head, block_bytes)
    tail = x_flat[n_head:]
    tail_out = tail * jax.nn.sigmoid(tail)
    return jnp.concatenate([head_out.reshape(-1), tail_out]).reshape(orig_shape)


if __name__ == "__main__":
    key = jax.random.PRNGKey(0)

    def ref(x):
        return x * jax.nn.sigmoid(x)

    # Primary case: small NCHW tensor (matches the PyTorch module usage).
    # Force the Pallas path (default would short-circuit tiny inputs to XLA).
    x = jax.random.normal(key, (2, 4, 16, 16), dtype=jnp.float32)
    y = swish(x, min_pallas_bytes=0)
    jax.block_until_ready(y)
    assert y.shape == x.shape and y.dtype == x.dtype
    assert jnp.allclose(y, ref(x), atol=1e-5, rtol=1e-5)

    # Same input through the tiny-input XLA short-circuit.
    y_sc = swish(x)
    jax.block_until_ready(y_sc)
    assert jnp.allclose(y_sc, ref(x), atol=1e-6, rtol=1e-6)

    # Ragged-tail case: n not a multiple of 128 (head kernel + jnp tail).
    k1, k2, k3 = jax.random.split(key, 3)
    x2 = jax.random.normal(k1, (3, 5, 7, 11), dtype=jnp.float32)
    y2 = swish(x2, min_pallas_bytes=0)
    jax.block_until_ready(y2)
    assert y2.shape == x2.shape
    assert jnp.allclose(y2, ref(x2), atol=1e-5, rtol=1e-5)

    # Multi-block case (small block_bytes forces grid > 1, partial last block ok).
    x3 = jax.random.normal(k2, (256, 4096), dtype=jnp.float32)
    y3 = swish(x3, block_bytes=512 * 1024)
    jax.block_until_ready(y3)
    assert jnp.allclose(y3, ref(x3), atol=1e-5, rtol=1e-5)

    # Medium tensor with chip-default block size (exercises the 2-block split
    # for megacore sharding on v7x).
    x4 = jax.random.normal(k3, (512, 2048), dtype=jnp.float32)
    y4 = swish(x4)
    jax.block_until_ready(y4)
    assert jnp.allclose(y4, ref(x4), atol=1e-5, rtol=1e-5)

    # bf16 input (exercises sublane=16 packing path).
    x5 = jax.random.normal(k3, (256, 2048), dtype=jnp.bfloat16)
    y5 = swish(x5)
    jax.block_until_ready(y5)
    assert y5.dtype == jnp.bfloat16
    assert jnp.allclose(
        y5.astype(jnp.float32), ref(x5.astype(jnp.float32)), atol=2e-2, rtol=2e-2
    )

    print("KERNEL_OK")
</pallas_src>

<mosaic_0001>
module attributes {stable_mosaic.version = 11 : i64} {
  func.func @_swish_kernel(%arg0: i32, %arg1: memref<1x2048xf32, #tpu.memory_space<vmem>>, %arg2: memref<1x2048xf32, #tpu.memory_space<vmem>>) attributes {dimension_semantics = [#tpu.dimension_semantics<parallel>], iteration_bounds = array<i64: 1>, scalar_prefetch = 0 : i64, scratch_operands = 0 : i64, tpu.core_type = #tpu.core_type<tc>, window_params = [{transform_indices = @transform_0, window_bounds = array<i64: 1, 2048>}, {transform_indices = @transform_1, window_bounds = array<i64: 1, 2048>}]} {
    %c0 = arith.constant 0 : index
    %c0_0 = arith.constant 0 : index
    %0 = vector.load %arg1[%c0, %c0_0] : memref<1x2048xf32, #tpu.memory_space<vmem>>, vector<1x2048xf32>
    %cst = arith.constant 5.000000e-01 : f32
    %1 = vector.broadcast %cst : f32 to vector<1x2048xf32>
    %2 = arith.mulf %1, %0 : vector<1x2048xf32>
    %3 = math.tanh %2 : vector<1x2048xf32>
    %cst_1 = arith.constant 1.000000e+00 : f32
    %4 = vector.broadcast %cst_1 : f32 to vector<1x2048xf32>
    %5 = arith.addf %3, %4 : vector<1x2048xf32>
    %cst_2 = arith.constant 5.000000e-01 : f32
    %6 = vector.broadcast %cst_2 : f32 to vector<1x2048xf32>
    %7 = arith.mulf %6, %5 : vector<1x2048xf32>
    %8 = arith.mulf %0, %7 : vector<1x2048xf32>
    %c0_3 = arith.constant 0 : index
    %c0_4 = arith.constant 0 : index
    %9 = vector.load %arg2[%c0_3, %c0_4] : memref<1x2048xf32, #tpu.memory_space<vmem>>, vector<1x2048xf32>
    tpu.vector_store %arg2[%c0_3, %c0_4], %8 {strides = array<i32>} : memref<1x2048xf32, #tpu.memory_space<vmem>>, vector<1x2048xf32>,
    return
  }
  func.func @transform_0(%arg0: i32) -> (i32, i32) {
    %c0_i32 = arith.constant 0 : i32
    %c0_i32_0 = arith.constant 0 : i32
    return %arg0, %c0_i32 : i32, i32
  }
  func.func @transform_1(%arg0: i32) -> (i32, i32) {
    %c0_i32 = arith.constant 0 : i32
    %c0_i32_0 = arith.constant 0 : i32
    return %arg0, %c0_i32 : i32, i32
  }
}

</mosaic_0001>

<llo_original>
// kernel: tpu_custom_call.1
$region0: #{tpu_custom_call.1}
  #allocation0 [shape = 'u32[]', space=smem, size = 0x4, offset = 0x4, fixed_abs, tag = 'smem constant byte address 0x4 - core index']
  #allocation1 [shape = 'u32[144,128]{1,0:T(1,128)}', space=vmem, size = 0x12000, scoped, tag = 'internal scratch']
  %s0 = inlined_call_operand.hbm [shape: f32[1,2048], index: 0, kind: input, shape index: {}]
  %s1 = inlined_call_operand.hbm [shape: f32[1,2048], index: 1, kind: output, shape index: {}]
  %s2 = sld [smem:[#allocation0]]
  $region18: #{tpu_custom_call.1} parent=0
    _
  %s4 = ssub.s32 1, %s2
  %s5 = scalar_select 0, %s4, %s2
  $region1: #{tpu_custom_call.1} parent=0
    #allocation2 [shape = 'u8[8192]{0}', space=vmem, size = 0x2000, scoped, tag = 'input window, operand 0, single buffered']
    #allocation3 [shape = 's32[1]{0}', space=sflag, size = 0x4, scoped, tag = 'scoped memory for tpu_custom_call.1']
    #allocation4 [shape = 's32[1]{0}', space=sflag, size = 0x4, scoped, tag = 'scoped memory for tpu_custom_call.1']
    #allocation5 [shape = 'u8[8192]{0}', space=vmem, size = 0x2000, scoped, tag = 'output window, operand 0, single buffered']
    %6 = vsyncpa [#allocation3], 0
    %7 = vsyncpa [#allocation4], 0
    // Predicated region
    $region2: #{tpu_custom_call.1} parent=1 // pred_check
      _
    $region3: #{tpu_custom_call.1} parent=1 // pred_check_branch
      %9 = sbr.rel (0) target = $region5
    $region4: #{tpu_custom_call.1} parent=1 // pred_region
      %s11 = ssub.s32 256, 256
      %12 = vsyncadd [#allocation3], %s11
      %s14 = sshll.u32 [#allocation2], 4
      %s15 = int_to_ptr.vmem [resolvable:$true] %s14
      %17 = dma.hbm_to_vmem [thread:$0]  %s0, 256, %s15, [#allocation3]
    $region5: #{tpu_custom_call.1} parent=1 // pred_fallthru
      _
    // Predicated region
    $region6: #{tpu_custom_call.1} parent=1 // pred_check
      _
    $region7: #{tpu_custom_call.1} parent=1 // pred_check_branch
      %19 = sbr.rel (0) target = $region9
    $region8: #{tpu_custom_call.1} parent=1 // pred_region
      %20 = dma.done [#allocation3], 256
    $region9: #{tpu_custom_call.1} parent=1 // pred_fallthru
      _
    %v21 = vld [vmem:[#allocation2] sm:$0xff]
    %v22 = vld [vmem:[#allocation2 + $0x8] sm:$0xff]
    %v23 = vmul.f32 %v21, 0.5
    %v24 = vmul.f32 %v22, 0.5
    %v25 = vtanh.pop %v23
    %v26 = vtanh.pop %v24
    %v27 = vadd.f32 %v25, 1.0
    %v28 = vadd.f32 %v26, 1.0
    %v29 = vmul.f32 %v27, 0.5
    %v30 = vmul.f32 %v28, 0.5
    %v31 = vmul.f32 %v21, %v29
    %v32 = vmul.f32 %v22, %v30
    %33 = vst [vmem:[#allocation5] sm:$0xff] %v31
    %34 = vst [vmem:[#allocation5 + $0x8] sm:$0xff] %v32
    // Predicated region
    $region10: #{tpu_custom_call.1} parent=1 // pred_check
      _
    $region11: #{tpu_custom_call.1} parent=1 // pred_check_branch
      %36 = sbr.rel (0) target = $region13
    $region12: #{tpu_custom_call.1} parent=1 // pred_region
      %s38 = ssub.s32 256, 256
      %39 = vsyncadd [#allocation4], %s38
      %s41 = sshll.u32 [#allocation5], 4
      %s42 = int_to_ptr.vmem [resolvable:$true] %s41
      %44 = dma.vmem_to_hbm [thread:$0]  %s42, 256, %s1, [#allocation4]
    $region13: #{tpu_custom_call.1} parent=1 // pred_fallthru
      _
    // Predicated region
    $region14: #{tpu_custom_call.1} parent=1 // pred_check
      _
    $region15: #{tpu_custom_call.1} parent=1 // pred_check_branch
      %46 = sbr.rel (0) target = $region17
    $region16: #{tpu_custom_call.1} parent=1 // pred_region
      %47 = dma.done [#allocation4], 256
    $region17: #{tpu_custom_call.1} parent=1 // pred_fallthru
      _
    %48 = vsyncpa [#allocation3], 1
    %49 = vsyncpa [#allocation4], 1

</llo_original>
